<compile_context>
chip_gen: v7x
topology: tpu7x:2x2x1
jax: 0.10.0
libtpu: 0.0.40
codegen_flags: <defaults>
</compile_context>

<pallas_src>
import jax
import jax.numpy as jnp
from jax.experimental import pallas as pl
from jax.experimental.pallas import tpu as pltpu

_MiB = 1024 * 1024


def _attention_kernel(x_ref, g_ref, wx_ref, wg_ref, wa_ref, bxg_ref, ba_ref, o_ref):
    # x_ref, g_ref : (C, T) bf16 one batch element, T spatial columns
    # o_ref        : (C, T) output tile
    # wx_ref, wg_ref : (E, C) f32 1x1 conv weights (out, in)
    # wa_ref         : (C, E) f32
    # bxg_ref        : (E, 1) f32  = bias_x + bias_g
    # ba_ref         : (C, 1) f32
    #
    # Upcast the bf16 HBM streams once; all math in f32 (v5e VPU has no bf16).
    x = x_ref[...].astype(jnp.float32)
    g = g_ref[...].astype(jnp.float32)

    # 1x1 convs == channel matmuls on the MXU: (E,C)@(C,T) -> (E,T), f32 acc.
    h = jnp.dot(wx_ref[...], x, preferred_element_type=jnp.float32)
    h = h + jnp.dot(wg_ref[...], g, preferred_element_type=jnp.float32)
    a = jnp.maximum(h + bxg_ref[...], 0.0)                             # ReLU
    att = jnp.dot(wa_ref[...], a, preferred_element_type=jnp.float32) + ba_ref[...]

    # softmax over channels (axis 0 here == PyTorch dim=1 on NCHW)
    att = att - jnp.max(att, axis=0, keepdims=True)
    e = jnp.exp(att)
    att = e * pl.reciprocal(jnp.sum(e, axis=0, keepdims=True), approx=True)

    o_ref[...] = (att * x).astype(o_ref.dtype)


def _vmem_capacity_bytes():
    """Physical per-core VMEM; conservative 64 MiB fallback (v7x)."""
    try:
        info = pltpu.get_tpu_info()
        cap = getattr(info, "vmem_capacity_bytes", None)
        if cap:
            return int(cap)
    except Exception:
        pass
    return 64 * _MiB


def _plan_tiles(n, c, e, hw, *, in_bytes, out_bytes):
    """Pick (tile_hw, vmem_limit_bytes) from the actual per-tile VMEM footprint."""
    cap = _vmem_capacity_bytes()
    # Scoped VMEM limit: ~16 MiB headroom below physical capacity.
    # -> ~48 MiB on v7x (64 MiB/TC), ~112 MiB on v5e/v6e (128 MiB).
    vmem_limit = int(max(32 * _MiB, min(cap - 16 * _MiB, 112 * _MiB)))

    # Resident weights / biases (double-buffered by the pipeline), f32.
    weight_bytes = 2 * (2 * e * c + c * e + e + c) * 4

    # Per-spatial-column VMEM:
    #   * double-buffered x/g input streams and out stream,
    #   * f32 in-kernel temporaries: x/g upcasts (2C), the (E,T) pre-activation
    #     and its ReLU (2E), and the (C,T) softmax temporaries (~3C).
    per_col = (2 * 2 * c * in_bytes            # x, g   (x2 pipeline buffers)
               + 2 * c * out_bytes             # out    (x2 pipeline buffers)
               + (5 * c + 2 * e) * 4)          # live f32 intermediates

    budget = vmem_limit - weight_bytes - 4 * _MiB      # misc/compiler slack
    max_tile = 32768 if cap >= 96 * _MiB else 16384    # bigger tiles on 128 MiB parts
    cap_cols = max(128, (budget // per_col // 128) * 128)
    thw = min(cap_cols, max_tile)

    if hw <= thw:
        thw = hw                   # one lane-dense block covers the whole row
    # Guarantee >=2 grid blocks so v7x's two TensorCores both get work
    # (neutral on single-TC v5e/v6e).
    if n * pl.cdiv(hw, thw) < 2 and hw > 128:
        thw = max(128, ((pl.cdiv(hw, 2) + 127) // 128) * 128)
    return int(thw), vmem_limit


def attention_block_2d(g, x, params, *, io_dtype=jnp.bfloat16, out_dtype=None):
    """g, x: (N, C, H, W).  Returns (N, C, H, W) in `out_dtype` (default bf16).

    Set io_dtype/out_dtype to jnp.float32 for a bit-strict f32 pipeline.
    """
    wg, bg, wx, bx, wa, ba = params
    N, C, H, W = x.shape
    E = wx.shape[0]
    HW = H * W
    out_dtype = io_dtype if out_dtype is None else out_dtype

    thw, vmem_limit = _plan_tiles(
        N, C, E, HW,
        in_bytes=jnp.dtype(io_dtype).itemsize,
        out_bytes=jnp.dtype(out_dtype).itemsize)
    n_hw = pl.cdiv(HW, thw)

    # NCHW -> (N, C, HW): pure reshape, no transpose.  Big streams go bf16.
    x3 = x.reshape(N, C, HW).astype(io_dtype)
    g3 = g.reshape(N, C, HW).astype(io_dtype)

    # Weights stay f32 (tiny, resident); biases pre-summed where possible.
    wx_ = wx.astype(jnp.float32)
    wg_ = wg.astype(jnp.float32)
    wa_ = wa.astype(jnp.float32)
    bxg = (bx + bg).reshape(E, 1).astype(jnp.float32)
    ba2 = ba.reshape(C, 1).astype(jnp.float32)

    row_spec = pl.BlockSpec((None, C, thw), lambda n, j: (n, 0, j))

    out3 = pl.pallas_call(
        _attention_kernel,
        out_shape=jax.ShapeDtypeStruct((N, C, HW), out_dtype),
        grid_spec=pltpu.PrefetchScalarGridSpec(
            num_scalar_prefetch=0,
            grid=(N, n_hw),
            in_specs=[
                row_spec,                                       # x   (C, thw) bf16
                row_spec,                                       # g   (C, thw) bf16
                pl.BlockSpec((E, C), lambda n, j: (0, 0)),      # Wx
                pl.BlockSpec((E, C), lambda n, j: (0, 0)),      # Wg
                pl.BlockSpec((C, E), lambda n, j: (0, 0)),      # Wa
                pl.BlockSpec((E, 1), lambda n, j: (0, 0)),      # bx + bg
                pl.BlockSpec((C, 1), lambda n, j: (0, 0)),      # ba
            ],
            out_specs=pl.BlockSpec((None, C, thw), lambda n, j: (n, 0, j)),
        ),
        compiler_params=pltpu.CompilerParams(
            dimension_semantics=("parallel", "parallel"),
            vmem_limit_bytes=vmem_limit,
        ),
    )(x3, g3, wx_, wg_, wa_, bxg, ba2)

    # (N, C, HW) -> NCHW: free reshape.
    return out3.reshape(N, C, H, W)


def init_params(key, in_channels, expand_channels):
    """Deterministic synthetic parameters (PyTorch Conv2d 1x1 equivalents).

    Conv2d weight (out, in, 1, 1) is stored as an (out, in) matrix.
    """
    k = jax.random.split(key, 6)
    scale_in = 1.0 / jnp.sqrt(in_channels)
    scale_ex = 1.0 / jnp.sqrt(expand_channels)
    wg = jax.random.uniform(k[0], (expand_channels, in_channels), jnp.float32,
                            -scale_in, scale_in)
    bg = jax.random.uniform(k[1], (expand_channels,), jnp.float32, -scale_in, scale_in)
    wx = jax.random.uniform(k[2], (expand_channels, in_channels), jnp.float32,
                            -scale_in, scale_in)
    bx = jax.random.uniform(k[3], (expand_channels,), jnp.float32, -scale_in, scale_in)
    wa = jax.random.uniform(k[4], (in_channels, expand_channels), jnp.float32,
                            -scale_ex, scale_ex)
    ba = jax.random.uniform(k[5], (in_channels,), jnp.float32, -scale_ex, scale_ex)
    return wg, bg, wx, bx, wa, ba


def _reference(g, x, params):
    """Pure-JAX f32 reference of the PyTorch forward (for verification)."""
    wg, bg, wx, bx, wa, ba = params
    xin = jnp.einsum('nchw,ec->nehw', x, wx) + bx[None, :, None, None]
    gin = jnp.einsum('nchw,ec->nehw', g, wg) + bg[None, :, None, None]
    a = jax.nn.relu(xin + gin)
    att = jnp.einsum('nehw,ce->nchw', a, wa) + ba[None, :, None, None]
    att = jax.nn.softmax(att, axis=1)   # nn.Softmax() on 4D input -> dim=1
    return att * x


if __name__ == "__main__":
    key = jax.random.PRNGKey(0)
    k_g, k_x, k_p = jax.random.split(key, 3)

    # Small correctness-demo shapes; see comments for the VMEM/tile math that
    # kicks in at realistic UNet sizes (C >= 8, large HW).
    N, C, E, H, W = 2, 4, 8, 16, 16
    g = jax.random.normal(k_g, (N, C, H, W), jnp.float32)
    x = jax.random.normal(k_x, (N, C, H, W), jnp.float32)
    params = init_params(k_p, C, E)

    out = attention_block_2d(g, x, params)           # bf16 I/O pipeline
    out = jax.block_until_ready(out)
    assert out.shape == (N, C, H, W)

    # Reference on the same bf16-quantized inputs (f32 math everywhere) so the
    # check isolates kernel-side error: approx-reciprocal softmax denominator
    # and the bf16 output store.
    xq = x.astype(jnp.bfloat16).astype(jnp.float32)
    gq = g.astype(jnp.bfloat16).astype(jnp.float32)
    ref = _reference(gq, xq, params)
    assert jnp.allclose(out.astype(jnp.float32), ref, atol=2e-2, rtol=2e-2), \
        "mismatch vs reference"

    print("KERNEL_OK")
</pallas_src>

<mosaic_0001>
module attributes {stable_mosaic.version = 11 : i64} {
  func.func @_attention_kernel(%arg0: i32, %arg1: i32, %arg2: memref<1x4x256xbf16, #tpu.memory_space<vmem>>, %arg3: memref<1x4x256xbf16, #tpu.memory_space<vmem>>, %arg4: memref<8x4xf32, #tpu.memory_space<vmem>>, %arg5: memref<8x4xf32, #tpu.memory_space<vmem>>, %arg6: memref<4x8xf32, #tpu.memory_space<vmem>>, %arg7: memref<8x1xf32, #tpu.memory_space<vmem>>, %arg8: memref<4x1xf32, #tpu.memory_space<vmem>>, %arg9: memref<1x4x256xbf16, #tpu.memory_space<vmem>>) attributes {dimension_semantics = [#tpu.dimension_semantics<parallel>, #tpu.dimension_semantics<parallel>], iteration_bounds = array<i64: 2, 1>, scalar_prefetch = 0 : i64, scratch_operands = 0 : i64, tpu.core_type = #tpu.core_type<tc>, window_params = [{transform_indices = @transform_0, window_bounds = array<i64: 1, 4, 256>}, {transform_indices = @transform_1, window_bounds = array<i64: 1, 4, 256>}, {pipeline_mode = #tpu.pipeline_mode<synchronous>, transform_indices = @transform_2, window_bounds = array<i64: 8, 4>}, {pipeline_mode = #tpu.pipeline_mode<synchronous>, transform_indices = @transform_3, window_bounds = array<i64: 8, 4>}, {pipeline_mode = #tpu.pipeline_mode<synchronous>, transform_indices = @transform_4, window_bounds = array<i64: 4, 8>}, {pipeline_mode = #tpu.pipeline_mode<synchronous>, transform_indices = @transform_5, window_bounds = array<i64: 8, 1>}, {pipeline_mode = #tpu.pipeline_mode<synchronous>, transform_indices = @transform_6, window_bounds = array<i64: 4, 1>}, {transform_indices = @transform_7, window_bounds = array<i64: 1, 4, 256>}]} {
    %c0 = arith.constant 0 : index
    %c0_0 = arith.constant 0 : index
    %c0_1 = arith.constant 0 : index
    %0 = vector.load %arg2[%c0, %c0_0, %c0_1] : memref<1x4x256xbf16, #tpu.memory_space<vmem>>, vector<1x4x256xbf16>
    %1 = vector.shape_cast %0 : vector<1x4x256xbf16> to vector<4x256xbf16>
    %2 = arith.extf %1 : vector<4x256xbf16> to vector<4x256xf32>
    %c0_2 = arith.constant 0 : index
    %c0_3 = arith.constant 0 : index
    %c0_4 = arith.constant 0 : index
    %3 = vector.load %arg3[%c0_2, %c0_3, %c0_4] : memref<1x4x256xbf16, #tpu.memory_space<vmem>>, vector<1x4x256xbf16>
    %4 = vector.shape_cast %3 : vector<1x4x256xbf16> to vector<4x256xbf16>
    %5 = arith.extf %4 : vector<4x256xbf16> to vector<4x256xf32>
    %c0_5 = arith.constant 0 : index
    %c0_6 = arith.constant 0 : index
    %6 = vector.load %arg4[%c0_5, %c0_6] : memref<8x4xf32, #tpu.memory_space<vmem>>, vector<8x4xf32>
    %cst = arith.constant dense<0.000000e+00> : vector<8x256xf32>
    %7 = tpu.matmul %6, %2, %cst {dimension_numbers = #tpu.dot_dimension_numbers<[1], [0], [0], [1], [0, 0, 1, 1], [], []>} : vector<8x4xf32>, vector<4x256xf32>, vector<8x256xf32> -> vector<8x256xf32>
    %c0_7 = arith.constant 0 : index
    %c0_8 = arith.constant 0 : index
    %8 = vector.load %arg5[%c0_7, %c0_8] : memref<8x4xf32, #tpu.memory_space<vmem>>, vector<8x4xf32>
    %cst_9 = arith.constant dense<0.000000e+00> : vector<8x256xf32>
    %9 = tpu.matmul %8, %5, %cst_9 {dimension_numbers = #tpu.dot_dimension_numbers<[1], [0], [0], [1], [0, 0, 1, 1], [], []>} : vector<8x4xf32>, vector<4x256xf32>, vector<8x256xf32> -> vector<8x256xf32>
    %10 = arith.addf %7, %9 : vector<8x256xf32>
    %c0_10 = arith.constant 0 : index
    %c0_11 = arith.constant 0 : index
    %11 = vector.load %arg7[%c0_10, %c0_11] : memref<8x1xf32, #tpu.memory_space<vmem>>, vector<8x1xf32>
    %12 = vector.broadcast %11 : vector<8x1xf32> to vector<8x256xf32>
    %13 = arith.addf %10, %12 : vector<8x256xf32>
    %cst_12 = arith.constant 0.000000e+00 : f32
    %14 = vector.broadcast %cst_12 : f32 to vector<8x256xf32>
    %15 = arith.maximumf %13, %14 : vector<8x256xf32>
    %c0_13 = arith.constant 0 : index
    %c0_14 = arith.constant 0 : index
    %16 = vector.load %arg6[%c0_13, %c0_14] : memref<4x8xf32, #tpu.memory_space<vmem>>, vector<4x8xf32>
    %cst_15 = arith.constant dense<0.000000e+00> : vector<4x256xf32>
    %17 = tpu.matmul %16, %15, %cst_15 {dimension_numbers = #tpu.dot_dimension_numbers<[1], [0], [0], [1], [0, 0, 1, 1], [], []>} : vector<4x8xf32>, vector<8x256xf32>, vector<4x256xf32> -> vector<4x256xf32>
    %c0_16 = arith.constant 0 : index
    %c0_17 = arith.constant 0 : index
    %18 = vector.load %arg8[%c0_16, %c0_17] : memref<4x1xf32, #tpu.memory_space<vmem>>, vector<4x1xf32>
    %19 = vector.broadcast %18 : vector<4x1xf32> to vector<4x256xf32>
    %20 = arith.addf %17, %19 : vector<4x256xf32>
    %cst_18 = arith.constant dense<0xFF800000> : vector<256xf32>
    %21 = vector.multi_reduction <maximumf>, %20, %cst_18 [0] : vector<4x256xf32> to vector<256xf32>
    %22 = vector.shape_cast %21 : vector<256xf32> to vector<1x256xf32>
    %23 = vector.broadcast %22 : vector<1x256xf32> to vector<4x256xf32>
    %24 = arith.subf %20, %23 : vector<4x256xf32>
    %25 = math.exp %24 : vector<4x256xf32>
    %cst_19 = arith.constant dense<0.000000e+00> : vector<256xf32>
    %26 = vector.multi_reduction <add>, %25, %cst_19 [0] : vector<4x256xf32> to vector<256xf32>
    %27 = vector.shape_cast %26 : vector<256xf32> to vector<1x256xf32>
    %28 = tpu.reciprocal %27 {approx = true} : vector<1x256xf32> -> vector<1x256xf32>
    %29 = vector.broadcast %28 : vector<1x256xf32> to vector<4x256xf32>
    %30 = arith.mulf %25, %29 : vector<4x256xf32>
    %31 = arith.mulf %30, %2 : vector<4x256xf32>
    %32 = arith.truncf %31 : vector<4x256xf32> to vector<4x256xbf16>
    %c0_20 = arith.constant 0 : index
    %c0_21 = arith.constant 0 : index
    %c0_22 = arith.constant 0 : index
    %33 = vector.load %arg9[%c0_20, %c0_21, %c0_22] : memref<1x4x256xbf16, #tpu.memory_space<vmem>>, vector<1x4x256xbf16>
    %34 = vector.shape_cast %33 : vector<1x4x256xbf16> to vector<4x256xbf16>
    %35 = vector.shape_cast %32 : vector<4x256xbf16> to vector<1x4x256xbf16>
    tpu.vector_store %arg9[%c0_20, %c0_21, %c0_22], %35 {strides = array<i32>} : memref<1x4x256xbf16, #tpu.memory_space<vmem>>, vector<1x4x256xbf16>,
    return
  }
  func.func @transform_0(%arg0: i32, %arg1: i32) -> (i32, i32, i32) {
    %c0_i32 = arith.constant 0 : i32
    %c0_i32_0 = arith.constant 0 : i32
    return %arg0, %c0_i32, %arg1 : i32, i32, i32
  }
  func.func @transform_1(%arg0: i32, %arg1: i32) -> (i32, i32, i32) {
    %c0_i32 = arith.constant 0 : i32
    %c0_i32_0 = arith.constant 0 : i32
    return %arg0, %c0_i32, %arg1 : i32, i32, i32
  }
  func.func @transform_2(%arg0: i32, %arg1: i32) -> (i32, i32) {
    %c0_i32 = arith.constant 0 : i32
    %c0_i32_0 = arith.constant 0 : i32
    %c0_i32_1 = arith.constant 0 : i32
    return %c0_i32, %c0_i32_0 : i32, i32
  }
  func.func @transform_3(%arg0: i32, %arg1: i32) -> (i32, i32) {
    %c0_i32 = arith.constant 0 : i32
    %c0_i32_0 = arith.constant 0 : i32
    %c0_i32_1 = arith.constant 0 : i32
    return %c0_i32, %c0_i32_0 : i32, i32
  }
  func.func @transform_4(%arg0: i32, %arg1: i32) -> (i32, i32) {
    %c0_i32 = arith.constant 0 : i32
    %c0_i32_0 = arith.constant 0 : i32
    %c0_i32_1 = arith.constant 0 : i32
    return %c0_i32, %c0_i32_0 : i32, i32
  }
  func.func @transform_5(%arg0: i32, %arg1: i32) -> (i32, i32) {
    %c0_i32 = arith.constant 0 : i32
    %c0_i32_0 = arith.constant 0 : i32
    %c0_i32_1 = arith.constant 0 : i32
    return %c0_i32, %c0_i32_0 : i32, i32
  }
  func.func @transform_6(%arg0: i32, %arg1: i32) -> (i32, i32) {
    %c0_i32 = arith.constant 0 : i32
    %c0_i32_0 = arith.constant 0 : i32
    %c0_i32_1 = arith.constant 0 : i32
    return %c0_i32, %c0_i32_0 : i32, i32
  }
  func.func @transform_7(%arg0: i32, %arg1: i32) -> (i32, i32, i32) {
    %c0_i32 = arith.constant 0 : i32
    %c0_i32_0 = arith.constant 0 : i32
    return %arg0, %c0_i32, %arg1 : i32, i32, i32
  }
}

</mosaic_0001>

<llo_original>
// kernel: tpu_custom_call.1
$region0: #{tpu_custom_call.1}
  #allocation0 [shape = 'u32[]', space=smem, size = 0x4, offset = 0x4, fixed_abs, tag = 'smem constant byte address 0x4 - core index']
  #allocation1 [shape = 'u32[144,128]{1,0:T(1,128)}', space=vmem, size = 0x12000, scoped, tag = 'internal scratch']
  %s0 = inlined_call_operand.vmem [shape: bf16[2,4,256], index: 0, kind: input, shape index: {}]
  %s1 = inlined_call_operand.vmem [shape: bf16[2,4,256], index: 1, kind: input, shape index: {}]
  %s2 = inlined_call_operand.vmem [shape: f32[8,4], index: 2, kind: input, shape index: {}]
  %s3 = inlined_call_operand.vmem [shape: f32[8,4], index: 3, kind: input, shape index: {}]
  %s4 = inlined_call_operand.vmem [shape: f32[4,8], index: 4, kind: input, shape index: {}]
  %s5 = inlined_call_operand.vmem [shape: f32[8,1], index: 5, kind: input, shape index: {}]
  %s6 = inlined_call_operand.vmem [shape: f32[4,1], index: 6, kind: input, shape index: {}]
  %s7 = inlined_call_operand.hbm [shape: bf16[2,4,256], index: 7, kind: output, shape index: {}]
  %s8 = sld [smem:[#allocation0]]
  $region61: #{tpu_custom_call.1} parent=0
    _
  %s10 = ssub.s32 1, %s8
  %s11 = scalar_select 0, %s10, %s8
  $region1: #{tpu_custom_call.1} parent=0
    #allocation2 [shape = 'u8[4096]{0}', space=vmem, size = 0x1000, scoped, tag = 'output window, operand 0']
    #allocation3 [shape = 's32[2]{0}', space=sflag, size = 0x8, scoped, tag = 'scoped memory for tpu_custom_call.1']
    %12 = vsyncpa [#allocation3], 0
    %s13 = scalar_lea.sflag [#allocation3], 1
    %14 = vsyncpa %s13, 0
    loop: start=0, step=1, limit=4
    $region2: #{tpu_custom_call.1} parent=1 // loop_pre_header
      _
    $region3: #{tpu_custom_call.1} parent=1 // loop_header
      %s16 = sphi 0, %s20
      %p17 = scmp.ge.s32.totalorder %s16, 4
      %s23 = sphi 0, %s35
      %s24 = sphi 0, %s31
      %s25 = sphi 0, %s23
      %s26 = sphi 0, %s24
      %s27 = sphi 0, %s25
      %s28 = sphi 0, %s26
      %s40 = sphi 0, %s42
      %s43 = sphi 0, %s40
      %s44 = sphi 0, %s43
      %s60 = sphi 0, %s44
      %s68 = sphi 0, %s70
      %s71 = sphi 0, %s68
      %s72 = sphi 0, %s71
      %s88 = sphi 0, %s72
      %s92 = sphi 0, %s92
      %s94 = sphi 0, %s92
      %s95 = sphi 0, %s94
      %s109 = sphi 0, %s95
      %s113 = sphi 0, %s113
      %s115 = sphi 0, %s113
      %s116 = sphi 0, %s115
      %s130 = sphi 0, %s116
      %s134 = sphi 0, %s134
      %s136 = sphi 0, %s134
      %s137 = sphi 0, %s136
      %s151 = sphi 0, %s137
      %s155 = sphi 0, %s155
      %s157 = sphi 0, %s155
      %s158 = sphi 0, %s157
      %s172 = sphi 0, %s158
      %s176 = sphi 0, %s176
      %s178 = sphi 0, %s176
      %s179 = sphi 0, %s178
      %s193 = sphi 0, %s179
      %s201 = sphi 0, %s203
      %s204 = sphi 0, %s201
      %s205 = sphi 0, %s204
      %s221 = sphi 0, %s205
    $region4: #{tpu_custom_call.1} parent=1 // loop_header_branch
      %19 = sbr.rel (%p17) target = $region8
    $region5: #{tpu_custom_call.1} parent=1 // loop_body
      %s21 = ssub.s32 %s16, 1
      %s22 = ssub.s32 %s16, 2
      %s29 = sadd.s32 1, %s24
      %p30 = scmp.ge.s32.totalorder %s29, 1
      %s31 = scalar_select %p30, 0, %s29
      %s32 = sadd.s32 1, %s23
      %s33 = scalar_select %p30, %s32, %s23
      %p34 = scmp.ge.s32.totalorder %s33, 2
      %s35 = scalar_select %p34, 0, %s33
      %s36 = ssub.s32 %s23, %s35
      %s37 = ssub.s32 %s24, %s31
      %s38 = sor.u32 %s36, %s37
      %p39 = scmp.eq.s32.totalorder %s38, 0
      %s41 = sadd.s32 %s40, 1
      %s42 = scalar_select %p39, %s40, %s41
      %p45 = pneg %p39
      %p46 = scmp.eq.s32.totalorder %s16, 1
      %p47 = por %p45, %p46
      %p48 = scmp.ne.s32.totalorder %s40, %s43
      %p49 = scmp.eq.s32.totalorder %s16, 0
      %p50 = por %p48, %p49
      %p51 = scmp.ne.s32.totalorder %s40, %s43
      %p52 = scmp.eq.s32.totalorder %s21, 1
      %p53 = por %p51, %p52
      %p54 = scmp.ne.s32.totalorder %s43, %s44
      %p55 = scmp.eq.s32.totalorder %s21, 0
      %p56 = por %p54, %p55
      %p57 = scmp.ne.s32.totalorder %s43, %s44
      %p58 = scmp.eq.s32.totalorder %s22, 1
      %p59 = por %p57, %p58
      %p61 = scmp.ne.s32.totalorder %s44, %s60
      %p62 = scmp.eq.s32.totalorder %s22, 0
      %p63 = por %p61, %p62
      %s64 = ssub.s32 %s23, %s35
      %s65 = ssub.s32 %s24, %s31
      %s66 = sor.u32 %s64, %s65
      %p67 = scmp.eq.s32.totalorder %s66, 0
      %s69 = sadd.s32 %s68, 1
      %s70 = scalar_select %p67, %s68, %s69
      %p73 = pneg %p67
      %p74 = scmp.eq.s32.totalorder %s16, 1
      %p75 = por %p73, %p74
      %p76 = scmp.ne.s32.totalorder %s68, %s71
      %p77 = scmp.eq.s32.totalorder %s16, 0
      %p78 = por %p76, %p77
      %p79 = scmp.ne.s32.totalorder %s68, %s71
      %p80 = scmp.eq.s32.totalorder %s21, 1
      %p81 = por %p79, %p80
      %p82 = scmp.ne.s32.totalorder %s71, %s72
      %p83 = scmp.eq.s32.totalorder %s21, 0
      %p84 = por %p82, %p83
      %p85 = scmp.ne.s32.totalorder %s71, %s72
      %p86 = scmp.eq.s32.totalorder %s22, 1
      %p87 = por %p85, %p86
      %p89 = scmp.ne.s32.totalorder %s72, %s88
      %p90 = scmp.eq.s32.totalorder %s22, 0
      %p91 = por %p89, %p90
      %s93 = sadd.s32 %s92, 1
      %p96 = scmp.eq.s32.totalorder %s16, 1
      %p97 = scmp.ne.s32.totalorder %s92, %s94
      %p98 = scmp.eq.s32.totalorder %s16, 0
      %p99 = por %p97, %p98
      %p100 = scmp.ne.s32.totalorder %s92, %s94
      %p101 = scmp.eq.s32.totalorder %s21, 1
      %p102 = por %p100, %p101
      %p103 = scmp.ne.s32.totalorder %s94, %s95
      %p104 = scmp.eq.s32.totalorder %s21, 0
      %p105 = por %p103, %p104
      %p106 = scmp.ne.s32.totalorder %s94, %s95
      %p107 = scmp.eq.s32.totalorder %s22, 1
      %p108 = por %p106, %p107
      %p110 = scmp.ne.s32.totalorder %s95, %s109
      %p111 = scmp.eq.s32.totalorder %s22, 0
      %p112 = por %p110, %p111
      %s114 = sadd.s32 %s113, 1
      %p117 = scmp.eq.s32.totalorder %s16, 1
      %p118 = scmp.ne.s32.totalorder %s113, %s115
      %p119 = scmp.eq.s32.totalorder %s16, 0
      %p120 = por %p118, %p119
      %p121 = scmp.ne.s32.totalorder %s113, %s115
      %p122 = scmp.eq.s32.totalorder %s21, 1
      %p123 = por %p121, %p122
      %p124 = scmp.ne.s32.totalorder %s115, %s116
      %p125 = scmp.eq.s32.totalorder %s21, 0
      %p126 = por %p124, %p125
      %p127 = scmp.ne.s32.totalorder %s115, %s116
      %p128 = scmp.eq.s32.totalorder %s22, 1
      %p129 = por %p127, %p128
      %p131 = scmp.ne.s32.totalorder %s116, %s130
      %p132 = scmp.eq.s32.totalorder %s22, 0
      %p133 = por %p131, %p132
      %s135 = sadd.s32 %s134, 1
      %p138 = scmp.eq.s32.totalorder %s16, 1
      %p139 = scmp.ne.s32.totalorder %s134, %s136
      %p140 = scmp.eq.s32.totalorder %s16, 0
      %p141 = por %p139, %p140
      %p142 = scmp.ne.s32.totalorder %s134, %s136
      %p143 = scmp.eq.s32.totalorder %s21, 1
      %p144 = por %p142, %p143
      %p145 = scmp.ne.s32.totalorder %s136, %s137
      %p146 = scmp.eq.s32.totalorder %s21, 0
      %p147 = por %p145, %p146
      %p148 = scmp.ne.s32.totalorder %s136, %s137
      %p149 = scmp.eq.s32.totalorder %s22, 1
      %p150 = por %p148, %p149
      %p152 = scmp.ne.s32.totalorder %s137, %s151
      %p153 = scmp.eq.s32.totalorder %s22, 0
      %p154 = por %p152, %p153
      %s156 = sadd.s32 %s155, 1
      %p159 = scmp.eq.s32.totalorder %s16, 1
      %p160 = scmp.ne.s32.totalorder %s155, %s157
      %p161 = scmp.eq.s32.totalorder %s16, 0
      %p162 = por %p160, %p161
      %p163 = scmp.ne.s32.totalorder %s155, %s157
      %p164 = scmp.eq.s32.totalorder %s21, 1
      %p165 = por %p163, %p164
      %p166 = scmp.ne.s32.totalorder %s157, %s158
      %p167 = scmp.eq.s32.totalorder %s21, 0
      %p168 = por %p166, %p167
      %p169 = scmp.ne.s32.totalorder %s157, %s158
      %p170 = scmp.eq.s32.totalorder %s22, 1
      %p171 = por %p169, %p170
      %p173 = scmp.ne.s32.totalorder %s158, %s172
      %p174 = scmp.eq.s32.totalorder %s22, 0
      %p175 = por %p173, %p174
      %s177 = sadd.s32 %s176, 1
      %p180 = scmp.eq.s32.totalorder %s16, 1
      %p181 = scmp.ne.s32.totalorder %s176, %s178
      %p182 = scmp.eq.s32.totalorder %s16, 0
      %p183 = por %p181, %p182
      %p184 = scmp.ne.s32.totalorder %s176, %s178
      %p185 = scmp.eq.s32.totalorder %s21, 1
      %p186 = por %p184, %p185
      %p187 = scmp.ne.s32.totalorder %s178, %s179
      %p188 = scmp.eq.s32.totalorder %s21, 0
      %p189 = por %p187, %p188
      %p190 = scmp.ne.s32.totalorder %s178, %s179
      %p191 = scmp.eq.s32.totalorder %s22, 1
      %p192 = por %p190, %p191
      %p194 = scmp.ne.s32.totalorder %s179, %s193
      %p195 = scmp.eq.s32.totalorder %s22, 0
      %p196 = por %p194, %p195
      %s197 = ssub.s32 %s23, %s35
      %s198 = ssub.s32 %s24, %s31
      %s199 = sor.u32 %s197, %s198
      %p200 = scmp.eq.s32.totalorder %s199, 0
      %s202 = sadd.s32 %s201, 1
      %s203 = scalar_select %p200, %s201, %s202
      %p206 = pneg %p200
      %p207 = scmp.eq.s32.totalorder %s16, 1
      %p208 = por %p206, %p207
      %p209 = scmp.ne.s32.totalorder %s201, %s204
      %p210 = scmp.eq.s32.totalorder %s16, 0
      %p211 = por %p209, %p210
      %p212 = scmp.ne.s32.totalorder %s201, %s204
      %p213 = scmp.eq.s32.totalorder %s21, 1
      %p214 = por %p212, %p213
      %p215 = scmp.ne.s32.totalorder %s204, %s205
      %p216 = scmp.eq.s32.totalorder %s21, 0
      %p217 = por %p215, %p216
      %p218 = scmp.ne.s32.totalorder %s204, %s205
      %p219 = scmp.eq.s32.totalorder %s22, 1
      %p220 = por %p218, %p219
      %p222 = scmp.ne.s32.totalorder %s205, %s221
      %p223 = scmp.eq.s32.totalorder %s22, 0
      %p224 = por %p222, %p223
      %p225 = scmp.le.s32.totalorder 1, %s16
      %p226 = scmp.lt.s32.totalorder %s16, 3
      %p227 = pnand %p225, %p226
      %p228 = pneg %p227
      // Predicated region
      $region9: #{tpu_custom_call.1} parent=5 // pred_check
        _
      $region10: #{tpu_custom_call.1} parent=5 // pred_check_branch
        %230 = sbr.rel (%p227) target = $region12
      $region11: #{tpu_custom_call.1} parent=5 // pred_region
        %s231 = ssub.s32 %s16, 1
        // Predicated region
        $region13: #{tpu_custom_call.1} parent=11 // pred_check
          %p232 = pneg %p105
        $region14: #{tpu_custom_call.1} parent=11 // pred_check_branch
          %234 = sbr.rel (%p232) target = $region16
        $region15: #{tpu_custom_call.1} parent=11 // pred_region
          _
        $region16: #{tpu_custom_call.1} parent=11 // pred_fallthru
          _
        // Predicated region
        $region17: #{tpu_custom_call.1} parent=11 // pred_check
          %p235 = pneg %p126
        $region18: #{tpu_custom_call.1} parent=11 // pred_check_branch
          %237 = sbr.rel (%p235) target = $region20
        $region19: #{tpu_custom_call.1} parent=11 // pred_region
          _
        $region20: #{tpu_custom_call.1} parent=11 // pred_fallthru
          _
        // Predicated region
        $region21: #{tpu_custom_call.1} parent=11 // pred_check
          %p238 = pneg %p147
        $region22: #{tpu_custom_call.1} parent=11 // pred_check_branch
          %240 = sbr.rel (%p238) target = $region24
        $region23: #{tpu_custom_call.1} parent=11 // pred_region
          _
        $region24: #{tpu_custom_call.1} parent=11 // pred_fallthru
          _
        // Predicated region
        $region25: #{tpu_custom_call.1} parent=11 // pred_check
          %p241 = pneg %p168
        $region26: #{tpu_custom_call.1} parent=11 // pred_check_branch
          %243 = sbr.rel (%p241) target = $region28
        $region27: #{tpu_custom_call.1} parent=11 // pred_region
          _
        $region28: #{tpu_custom_call.1} parent=11 // pred_fallthru
          _
        // Predicated region
        $region29: #{tpu_custom_call.1} parent=11 // pred_check
          %p244 = pneg %p189
        $region30: #{tpu_custom_call.1} parent=11 // pred_check_branch
          %246 = sbr.rel (%p244) target = $region32
        $region31: #{tpu_custom_call.1} parent=11 // pred_region
          _
        $region32: #{tpu_custom_call.1} parent=11 // pred_fallthru
          _
      $region12: #{tpu_custom_call.1} parent=5 // pred_fallthru
        _
      %p247 = scmp.lt.s32.totalorder %s16, 2
      // Predicated region
      $region33: #{tpu_custom_call.1} parent=5 // pred_check
        %p248 = pneg %p247
      $region34: #{tpu_custom_call.1} parent=5 // pred_check_branch
        %250 = sbr.rel (%p248) target = $region36
      $region35: #{tpu_custom_call.1} parent=5 // pred_region
        // Predicated region
        $region37: #{tpu_custom_call.1} parent=35 // pred_check
          %p251 = pneg %p50
        $region38: #{tpu_custom_call.1} parent=35 // pred_check_branch
          %253 = sbr.rel (%p251) target = $region40
        $region39: #{tpu_custom_call.1} parent=35 // pred_region
          %s254 = smul.u32 2, %s24
          %p255 = scmp.lt.s32.totalorder %s23, 1
          %s256 = scalar_select %p255, %s23, 1
          %p257 = scmp.lt.s32.totalorder %s254, 1
          %s258 = scalar_select %p257, %s254, 1
          %s259 = smul.addr %s256, 2
          %s260 = sadd.s32 %s258, %s259
          %s261 = smul.addr %s260, 2
          %s262 = scalar_lea.vmem %s0, %s261
          %s263 = smul.u32 2, %s24
        $region40: #{tpu_custom_call.1} parent=35 // pred_fallthru
          _
        // Predicated region
        $region41: #{tpu_custom_call.1} parent=35 // pred_check
          %p264 = pneg %p78
        $region42: #{tpu_custom_call.1} parent=35 // pred_check_branch
          %266 = sbr.rel (%p264) target = $region44
        $region43: #{tpu_custom_call.1} parent=35 // pred_region
          %s267 = smul.u32 2, %s24
          %p268 = scmp.lt.s32.totalorder %s23, 1
          %s269 = scalar_select %p268, %s23, 1
          %p270 = scmp.lt.s32.totalorder %s267, 1
          %s271 = scalar_select %p270, %s267, 1
          %s272 = smul.addr %s269, 2
          %s273 = sadd.s32 %s271, %s272
          %s274 = smul.addr %s273, 2
          %s275 = scalar_lea.vmem %s1, %s274
          %s276 = smul.u32 2, %s24
        $region44: #{tpu_custom_call.1} parent=35 // pred_fallthru
          _
      $region36: #{tpu_custom_call.1} parent=5 // pred_fallthru
        _
      %p277 = scmp.le.s32.totalorder 1, %s16
      %p278 = scmp.lt.s32.totalorder %s16, 3
      %p279 = pnand %p277, %p278
      %p280 = pneg %p279
      // Predicated region
      $region45: #{tpu_custom_call.1} parent=5 // pred_check
        _
      $region46: #{tpu_custom_call.1} parent=5 // pred_check_branch
        %282 = sbr.rel (%p279) target = $region48
      $region47: #{tpu_custom_call.1} parent=5 // pred_region
        %s283 = ssub.s32 %s16, 1
        %s284 = smul.u32 2, %s26
        %p285 = scmp.lt.s32.totalorder %s25, 1
        %s286 = scalar_select %p285, %s25, 1
        %p287 = scmp.lt.s32.totalorder %s284, 1
        %s288 = scalar_select %p287, %s284, 1
        %s289 = smul.addr %s286, 2
        %s290 = sadd.s32 %s288, %s289
        %s291 = smul.addr %s290, 2
        %s292 = scalar_lea.vmem %s0, %s291
        %p293 = pneg %p56
        %p294 = pneg %p53
        %s295 = smul.u32 2, %s26
        %p296 = scmp.lt.s32.totalorder %s25, 1
        %s297 = scalar_select %p296, %s25, 1
        %p298 = scmp.lt.s32.totalorder %s295, 1
        %s299 = scalar_select %p298, %s295, 1
        %s300 = smul.addr %s297, 2
        %s301 = sadd.s32 %s299, %s300
        %s302 = smul.addr %s301, 2
        %s303 = scalar_lea.vmem %s1, %s302
        %p304 = pneg %p84
        %p305 = pneg %p81
        %p306 = pneg %p105
        %p307 = pneg %p102
        %p308 = pneg %p126
        %p309 = pneg %p123
        %p310 = pneg %p147
        %p311 = pneg %p144
        %p312 = pneg %p168
        %p313 = pneg %p165
        %p314 = pneg %p189
        %p315 = pneg %p186
        %p316 = pneg %p217
        %p317 = pneg %p214
        %s318 = sand.u32 %s204, 1
        %s319 = scalar_lea.sflag [#allocation3], %s318
        %s320 = sand.u32 %s204, 1
        %s321 = smul.addr %s320, 4
        %s322 = scalar_lea.vmem [#allocation2], %s321
        %s323 = smul.u32 2, %s26
        %p324 = scmp.lt.s32.totalorder %s25, 1
        %s325 = scalar_select %p324, %s25, 1
        %p326 = scmp.lt.s32.totalorder %s323, 1
        %s327 = scalar_select %p326, %s323, 1
        %s328 = smul.addr %s325, 2
        %s329 = sadd.s32 %s327, %s328
        %s330 = smul.addr %s329, 2
        %s331 = scalar_lea.vmem %s0, %s330
        %s332 = smul.u32 2, %s26
        %s333 = smul.u32 2, %s26
        %p334 = scmp.lt.s32.totalorder %s25, 1
        %s335 = scalar_select %p334, %s25, 1
        %p336 = scmp.lt.s32.totalorder %s333, 1
        %s337 = scalar_select %p336, %s333, 1
        %s338 = smul.addr %s335, 2
        %s339 = sadd.s32 %s337, %s338
        %s340 = smul.addr %s339, 2
        %s341 = scalar_lea.vmem %s1, %s340
        %s342 = smul.u32 2, %s26
        %s343 = smul.u32 2, %s26
        %v344 = vld [vmem:[%s331] sm:$0xf]
        %v345 = vunpack.c.l.bf16 %v344
        %v346 = vld [vmem:[%s341] sm:$0xf]
        %v347 = vunpack.c.l.bf16 %v346
        %v348 = vld [vmem:[%s2] sm:$0xff]
        %v349 = vld [vmem:[%s3] sm:$0xff]
        %v351 = vcombine.high %v347, %v347
        %vm352 = vcmask 31744
        %v354 = vsel %vm352, %v349, 0
        %vm356 = vcmask 1043456
        %v357 = vsel %vm356, %v347, 0
        %v359 = vsel %vm356, %v351, 0
        %361 = vmatprep.subr.mxu0 %v359
        %362 = vmatpush1.msra.mxu0 %v357
        %363 = vmatprep.subr.mxu0 0.0
        %364 = vmatpush1.msra.mxu0 0.0
        %365 = vmatprep.subr.mxu0 0.0
        %366 = vmatpush1.msra.mxu0 0.0
        %367 = vmatprep.subr.mxu0 0.0
        %368 = vmatpush1.msra.mxu0 0.0
        %369 = vmatprep.subr.mxu0 0.0
        %370 = vmatpush1.msra.mxu0 0.0
        %371 = vmatprep.subr.mxu0 0.0
        %372 = vmatpush1.msra.mxu0 0.0
        %373 = vmatprep.subr.mxu0 0.0
        %374 = vmatpush1.msra.mxu0 0.0
        %375 = vmatprep.subr.mxu0 0.0
        %376 = vmatpush1.msra.mxu0 0.0
        %377 = vmatprep.subr.mxu0 0.0
        %378 = vmatpush1.msra.mxu0 0.0
        %379 = vmatprep.subr.mxu0 0.0
        %380 = vmatpush1.msra.mxu0 0.0
        %381 = vmatprep.subr.mxu0 0.0
        %382 = vmatpush1.msra.mxu0 0.0
        %383 = vmatprep.subr.mxu0 0.0
        %384 = vmatpush1.msra.mxu0 0.0
        %385 = vmatprep.subr.mxu0 0.0
        %386 = vmatpush1.msra.mxu0 0.0
        %387 = vmatprep.subr.mxu0 0.0
        %388 = vmatpush1.msra.mxu0 0.0
        %389 = vmatprep.subr.mxu0 0.0
        %390 = vmatpush1.msra.mxu0 0.0
        %391 = vmatprep.subr.mxu0 0.0
        %392 = vmatpush1.msra.mxu0 0.0
        %393 = vmatprep.subr.mxu0 0.0
        %394 = vmatpush1.msra.mxu0 0.0
        %395 = vmatprep.subr.mxu0 0.0
        %396 = vmatpush1.msra.mxu0 0.0
        %397 = vmatprep.subr.mxu0 0.0
        %398 = vmatpush1.msra.mxu0 0.0
        %399 = vmatprep.subr.mxu0 0.0
        %400 = vmatpush1.msra.mxu0 0.0
        %401 = vmatprep.subr.mxu0 0.0
        %402 = vmatpush1.msra.mxu0 0.0
        %403 = vmatprep.subr.mxu0 0.0
        %404 = vmatpush1.msra.mxu0 0.0
        %405 = vmatprep.subr.mxu0 0.0
        %406 = vmatpush1.msra.mxu0 0.0
        %407 = vmatprep.subr.mxu0 0.0
        %408 = vmatpush1.msra.mxu0 0.0
        %409 = vmatprep.subr.mxu0 0.0
        %410 = vmatpush1.msra.mxu0 0.0
        %411 = vmatprep.subr.mxu0 0.0
        %412 = vmatpush1.msra.mxu0 0.0
        %413 = vmatprep.subr.mxu0 0.0
        %414 = vmatpush1.msra.mxu0 0.0
        %415 = vmatprep.subr.mxu0 0.0
        %416 = vmatpush1.msra.mxu0 0.0
        %417 = vmatprep.subr.mxu0 0.0
        %418 = vmatpush1.msra.mxu0 0.0
        %419 = vmatprep.subr.mxu0 0.0
        %420 = vmatpush1.msra.mxu0 0.0
        %421 = vmatprep.subr.mxu0 0.0
        %422 = vmatpush1.msra.mxu0 0.0
        %423 = vmatprep.subr.mxu0 0.0
        %424 = vmatpush1.msra.mxu0 0.0
        %425 = vmatprep.mubr.f32.mxu0 0.0
        %426 = vmatmul.mubr.f32.gmra.mrb[0].mxu0 %v354
        %v427 = vpop.f32.mrb[0].mxu0
        %v428 = vadd.f32 0.0, %v427
        %v429 = vpop.f32.mrb[0].mxu0
        %v430 = vadd.f32 0.0, %v429
        %431 = vdwg.mxu0
        %v433 = vcombine.high %v345, %v345
        %v435 = vsel %vm352, %v348, 0
        %v437 = vsel %vm356, %v345, 0
        %v439 = vsel %vm356, %v433, 0
        %441 = vmatprep.subr.mxu0 %v439
        %442 = vmatpush1.msra.mxu0 %v437
        %443 = vmatprep.subr.mxu0 0.0
        %444 = vmatpush1.msra.mxu0 0.0
        %445 = vmatprep.subr.mxu0 0.0
        %446 = vmatpush1.msra.mxu0 0.0
        %447 = vmatprep.subr.mxu0 0.0
        %448 = vmatpush1.msra.mxu0 0.0
        %449 = vmatprep.subr.mxu0 0.0
        %450 = vmatpush1.msra.mxu0 0.0
        %451 = vmatprep.subr.mxu0 0.0
        %452 = vmatpush1.msra.mxu0 0.0
        %453 = vmatprep.subr.mxu0 0.0
        %454 = vmatpush1.msra.mxu0 0.0
        %455 = vmatprep.subr.mxu0 0.0
        %456 = vmatpush1.msra.mxu0 0.0
        %457 = vmatprep.subr.mxu0 0.0
        %458 = vmatpush1.msra.mxu0 0.0
        %459 = vmatprep.subr.mxu0 0.0
        %460 = vmatpush1.msra.mxu0 0.0
        %461 = vmatprep.subr.mxu0 0.0
        %462 = vmatpush1.msra.mxu0 0.0
        %463 = vmatprep.subr.mxu0 0.0
        %464 = vmatpush1.msra.mxu0 0.0
        %465 = vmatprep.subr.mxu0 0.0
        %466 = vmatpush1.msra.mxu0 0.0
        %467 = vmatprep.subr.mxu0 0.0
        %468 = vmatpush1.msra.mxu0 0.0
        %469 = vmatprep.subr.mxu0 0.0
        %470 = vmatpush1.msra.mxu0 0.0
        %471 = vmatprep.subr.mxu0 0.0
        %472 = vmatpush1.msra.mxu0 0.0
        %473 = vmatprep.subr.mxu0 0.0
        %474 = vmatpush1.msra.mxu0 0.0
        %475 = vmatprep.subr.mxu0 0.0
        %476 = vmatpush1.msra.mxu0 0.0
        %477 = vmatprep.subr.mxu0 0.0
        %478 = vmatpush1.msra.mxu0 0.0
        %479 = vmatprep.subr.mxu0 0.0
        %480 = vmatpush1.msra.mxu0 0.0
        %481 = vmatprep.subr.mxu0 0.0
        %482 = vmatpush1.msra.mxu0 0.0
        %483 = vmatprep.subr.mxu0 0.0
        %484 = vmatpush1.msra.mxu0 0.0
        %485 = vmatprep.subr.mxu0 0.0
        %486 = vmatpush1.msra.mxu0 0.0
        %487 = vmatprep.subr.mxu0 0.0
        %488 = vmatpush1.msra.mxu0 0.0
        %489 = vmatprep.subr.mxu0 0.0
        %490 = vmatpush1.msra.mxu0 0.0
        %491 = vmatprep.subr.mxu0 0.0
        %492 = vmatpush1.msra.mxu0 0.0
        %493 = vmatprep.subr.mxu0 0.0
        %494 = vmatpush1.msra.mxu0 0.0
        %495 = vmatprep.subr.mxu0 0.0
        %496 = vmatpush1.msra.mxu0 0.0
        %497 = vmatprep.subr.mxu0 0.0
        %498 = vmatpush1.msra.mxu0 0.0
        %499 = vmatprep.subr.mxu0 0.0
        %500 = vmatpush1.msra.mxu0 0.0
        %501 = vmatprep.subr.mxu0 0.0
        %502 = vmatpush1.msra.mxu0 0.0
        %503 = vmatprep.subr.mxu0 0.0
        %504 = vmatpush1.msra.mxu0 0.0
        %505 = vmatprep.mubr.f32.mxu0 0.0
        %506 = vmatmul.mubr.f32.gmra.mrb[0].mxu0 %v435
        %v507 = vpop.f32.mrb[0].mxu0
        %v508 = vadd.f32 %v428, %v507
        %v509 = vpop.f32.mrb[0].mxu0
        %v510 = vadd.f32 %v430, %v509
        %511 = vdwg.mxu0
        %v512 = vld [vmem:[%s5] sm:$0xff]
        %514 = vset.pattern.permute.xlu0 0
        %515 = vperm.xlu0 %514, %v512
        %v516 = vpop.permute.xlu0 %515
        %v518 = vadd.f32 %v508, %v516
        %v519 = vadd.f32 %v510, %v516
        %v520 = vmax.f32 %v518, 0.0
        %v521 = vmax.f32 %v519, 0.0
        %v522 = vld [vmem:[%s4] sm:$0xf]
        %v523 = vld [vmem:[%s6] sm:$0xf]
        %525 = vset.pattern.permute.xlu0 0
        %526 = vperm.xlu0 %525, %v523
        %v527 = vpop.permute.xlu0 %526
        %vm529 = vcmask 64512
        %v531 = vsel %vm529, %v522, 0
        %533 = vmatprep.subr.mxu0 %v521
        %534 = vmatpush1.msra.mxu0 %v520
        %535 = vmatprep.subr.mxu0 0.0
        %536 = vmatpush1.msra.mxu0 0.0
        %537 = vmatprep.subr.mxu0 0.0
        %538 = vmatpush1.msra.mxu0 0.0
        %539 = vmatprep.subr.mxu0 0.0
        %540 = vmatpush1.msra.mxu0 0.0
        %541 = vmatprep.subr.mxu0 0.0
        %542 = vmatpush1.msra.mxu0 0.0
        %543 = vmatprep.subr.mxu0 0.0
        %544 = vmatpush1.msra.mxu0 0.0
        %545 = vmatprep.subr.mxu0 0.0
        %546 = vmatpush1.msra.mxu0 0.0
        %547 = vmatprep.subr.mxu0 0.0
        %548 = vmatpush1.msra.mxu0 0.0
        %549 = vmatprep.subr.mxu0 0.0
        %550 = vmatpush1.msra.mxu0 0.0
        %551 = vmatprep.subr.mxu0 0.0
        %552 = vmatpush1.msra.mxu0 0.0
        %553 = vmatprep.subr.mxu0 0.0
        %554 = vmatpush1.msra.mxu0 0.0
        %555 = vmatprep.subr.mxu0 0.0
        %556 = vmatpush1.msra.mxu0 0.0
        %557 = vmatprep.subr.mxu0 0.0
        %558 = vmatpush1.msra.mxu0 0.0
        %559 = vmatprep.subr.mxu0 0.0
        %560 = vmatpush1.msra.mxu0 0.0
        %561 = vmatprep.subr.mxu0 0.0
        %562 = vmatpush1.msra.mxu0 0.0
        %563 = vmatprep.subr.mxu0 0.0
        %564 = vmatpush1.msra.mxu0 0.0
        %565 = vmatprep.subr.mxu0 0.0
        %566 = vmatpush1.msra.mxu0 0.0
        %567 = vmatprep.subr.mxu0 0.0
        %568 = vmatpush1.msra.mxu0 0.0
        %569 = vmatprep.subr.mxu0 0.0
        %570 = vmatpush1.msra.mxu0 0.0
        %571 = vmatprep.subr.mxu0 0.0
        %572 = vmatpush1.msra.mxu0 0.0
        %573 = vmatprep.subr.mxu0 0.0
        %574 = vmatpush1.msra.mxu0 0.0
        %575 = vmatprep.subr.mxu0 0.0
        %576 = vmatpush1.msra.mxu0 0.0
        %577 = vmatprep.subr.mxu0 0.0
        %578 = vmatpush1.msra.mxu0 0.0
        %579 = vmatprep.subr.mxu0 0.0
        %580 = vmatpush1.msra.mxu0 0.0
        %581 = vmatprep.subr.mxu0 0.0
        %582 = vmatpush1.msra.mxu0 0.0
        %583 = vmatprep.subr.mxu0 0.0
        %584 = vmatpush1.msra.mxu0 0.0
        %585 = vmatprep.subr.mxu0 0.0
        %586 = vmatpush1.msra.mxu0 0.0
        %587 = vmatprep.subr.mxu0 0.0
        %588 = vmatpush1.msra.mxu0 0.0
        %589 = vmatprep.subr.mxu0 0.0
        %590 = vmatpush1.msra.mxu0 0.0
        %591 = vmatprep.subr.mxu0 0.0
        %592 = vmatpush1.msra.mxu0 0.0
        %593 = vmatprep.subr.mxu0 0.0
        %594 = vmatpush1.msra.mxu0 0.0
        %595 = vmatprep.subr.mxu0 0.0
        %596 = vmatpush1.msra.mxu0 0.0
        %597 = vmatprep.mubr.f32.mxu0 0.0
        %598 = vmatmul.mubr.f32.gmra.mrb[0].mxu0 %v531
        %v599 = vpop.f32.mrb[0].mxu0
        %v600 = vadd.f32 %v527, %v599
        %v601 = vpop.f32.mrb[0].mxu0
        %v602 = vadd.f32 %v527, %v601
        %603 = vdwg.mxu0
        %v604 = vsel %vm356, %v600, -inf
        %v605 = vrot.slane %v604, 4
        %v606 = vmax.f32 %v604, %v605
        %v607 = vrot.slane %v606, 2
        %v608 = vmax.f32 %v606, %v607
        %v609 = vrot.slane %v608, 1
        %v610 = vmax.f32 %v608, %v609
        %v611 = vsel %vm356, %v602, -inf
        %v612 = vrot.slane %v611, 4
        %v613 = vmax.f32 %v611, %v612
        %v614 = vrot.slane %v613, 2
        %v615 = vmax.f32 %v613, %v614
        %v616 = vrot.slane %v615, 1
        %v617 = vmax.f32 %v615, %v616
        %v618 = vsub.f32 %v600, %v610
        %v619 = vsub.f32 %v602, %v617
        %v620 = vmul.f32 %v618, 1.442695
        %v621 = vpow.pop %v620
        %v622 = vmul.f32 %v619, 1.442695
        %v623 = vpow.pop %v622
        %v624 = vsel %vm356, %v621, 0.0
        %v625 = vrot.slane %v624, 4
        %v626 = vadd.f32 %v624, %v625
        %v627 = vrot.slane %v626, 2
        %v628 = vadd.f32 %v626, %v627
        %v629 = vrot.slane %v628, 1
        %v630 = vadd.f32 %v628, %v629
        %v631 = vsel %vm356, %v623, 0.0
        %v632 = vrot.slane %v631, 4
        %v633 = vadd.f32 %v631, %v632
        %v634 = vrot.slane %v633, 2
        %v635 = vadd.f32 %v633, %v634
        %v636 = vrot.slane %v635, 1
        %v637 = vadd.f32 %v635, %v636
        %v638 = vrcp.pop %v630
        %v639 = vrcp.pop %v637
        %v640 = vmul.f32 %v621, %v638
        %v641 = vmul.f32 %v623, %v639
        %v643 = vmul.f32 %v640, %v345
        %v644 = vmul.f32 %v641, %v433
        %v645 = vpack.c.bf16 %v643, %v643
        %v646 = vpack.c.bf16 %v644, %v644
        %v649 = vcombine.low %v645, %v646
        %v651 = vunpack.c.l.s4 1983009808
        %v652 = vunpack.c.0.s8 %v651
        %v653 = vlaneseq
        %v654 = vshrl.u32 %v653, 7
        %v655 = vsub.s32 %v652, %v654
        %v656 = vrot.slane %v649, %v655
        %658 = vst [vmem:[%s322] sm:$0xf] %v656
        %s659 = sand.u32 %s204, 1
        %s660 = scalar_lea.sflag [#allocation3], %s659
        %s661 = sand.u32 %s204, 1
        %s662 = smul.addr %s661, 4
        %s663 = scalar_lea.vmem [#allocation2], %s662
        // Predicated region
        $region49: #{tpu_custom_call.1} parent=47 // pred_check
          %p664 = pneg %p214
        $region50: #{tpu_custom_call.1} parent=47 // pred_check_branch
          %666 = sbr.rel (%p664) target = $region52
        $region51: #{tpu_custom_call.1} parent=47 // pred_region
          %s667 = smul.u32 2, %s26
          %s669 = ssub.s32 64, 64
          %670 = vsyncadd %s660, %s669
          %s671 = smul.addr %s25, 2
          %s672 = sadd.s32 %s667, %s671
          %s673 = smul.addr %s672, 32
          %s674 = scalar_lea.hbm %s7, %s673
          %s676 = sshll.u32 %s663, 4
          %s677 = int_to_ptr.vmem [resolvable:$true] %s676
          %679 = dma.vmem_to_hbm [thread:$0]  %s677, 64, %s674, %s660
        $region52: #{tpu_custom_call.1} parent=47 // pred_fallthru
          _
      $region48: #{tpu_custom_call.1} parent=5 // pred_fallthru
        _
      %p680 = scmp.le.s32.totalorder 2, %s16
      // Predicated region
      $region53: #{tpu_custom_call.1} parent=5 // pred_check
        %p681 = pneg %p680
      $region54: #{tpu_custom_call.1} parent=5 // pred_check_branch
        %683 = sbr.rel (%p681) target = $region56
      $region55: #{tpu_custom_call.1} parent=5 // pred_region
        %s684 = ssub.s32 %s16, 2
        // Predicated region
        $region57: #{tpu_custom_call.1} parent=55 // pred_check
          %p685 = pneg %p220
        $region58: #{tpu_custom_call.1} parent=55 // pred_check_branch
          %687 = sbr.rel (%p685) target = $region60
        $region59: #{tpu_custom_call.1} parent=55 // pred_region
          %s688 = sand.u32 %s205, 1
          %s689 = scalar_lea.sflag [#allocation3], %s688
          %s690 = sand.u32 %s205, 1
          %s691 = smul.addr %s690, 4
          %s692 = scalar_lea.vmem [#allocation2], %s691
          %693 = dma.done %s689, 64
        $region60: #{tpu_custom_call.1} parent=55 // pred_fallthru
          _
      $region56: #{tpu_custom_call.1} parent=5 // pred_fallthru
        _
    $region6: #{tpu_custom_call.1} parent=1 // loop_footer
      %s20 = sadd.s32 1, %s16
    $region7: #{tpu_custom_call.1} parent=1 // loop_footer_branch
      %15 = sbr.rel target = $region3
    $region8: #{tpu_custom_call.1} parent=1 // loop_exit
      _
    %694 = vsyncpa [#allocation3], 1
    %s695 = scalar_lea.sflag [#allocation3], 1
    %696 = vsyncpa %s695, 1

</llo_original>
